<compile_context>
chip_gen: v5e
topology: v5e:2x2
jax: 0.10.0
libtpu: 0.0.40
codegen_flags: <defaults>
</compile_context>

<pallas_src>
import math
import functools

import jax
import jax.numpy as jnp
from jax.experimental import pallas as pl
from jax.experimental.pallas import tpu as pltpu


def _softsign(x):
    return x / (1.0 + jnp.abs(x))


def _heads_per_group(num_heads, head_dim):
    """How many heads each grid step handles, chosen so the per-step output
    block (S, heads_per_group*head_dim) is lane-aligned (multiple of 128)
    whenever possible; otherwise fall back to all heads (full-width block)."""
    if head_dim % 128 == 0:
        return 1
    if 128 % head_dim == 0:
        hb = 128 // head_dim
        if num_heads % hb == 0:
            return hb
    return num_heads


def _attn_kernel(x_ref, w_ref, b_ref, o_ref, *,
                 heads_per_group, head_dim, inv_dh, exp_dtype):
    # x_ref: [1, S, H]      w_ref: [H, 3G] packed [Wq_g^T | Wk_g^T | Wv_g^T]
    # b_ref: [1, 3G] (f32)  o_ref: [1, S, G]  with G = heads_per_group*head_dim
    G = heads_per_group * head_dim
    matmul_dtype = w_ref.dtype

    x = x_ref[0].astype(matmul_dtype)                               # [S, H]

    # Fused Q/K/V projection: one wide GEMM, f32 accumulation, f32 bias add.
    qkv = jnp.dot(x, w_ref[...],
                  preferred_element_type=jnp.float32) + b_ref[...]  # [S, 3G]
    q = qkv[:, 0 * G:1 * G]
    k = qkv[:, 1 * G:2 * G]
    v = qkv[:, 2 * G:3 * G]

    # combined key = key/dh + softsign(softsign(key)/dh) + value, with the
    # extra 1/dh score scaling folded into this small [S, G] tensor (f32 VPU).
    ck = (k * inv_dh + _softsign(_softsign(k) * inv_dh) + v) * inv_dh

    q_m = q.astype(matmul_dtype)
    ck_m = ck.astype(matmul_dtype)
    v_m = v.astype(matmul_dtype)

    # Per-head attention for this head group (<= 2 heads at BERT-base; the
    # head-group grid axis bounds live ranges instead of a 12-wide unroll).
    ctx_parts = []
    for h in range(heads_per_group):
        lo, hi = h * head_dim, (h + 1) * head_dim
        q_h, ck_h, v_h = q_m[:, lo:hi], ck_m[:, lo:hi], v_m[:, lo:hi]

        # scores = q_h @ combined_key_h.T  (all scaling already folded in)
        scores = jax.lax.dot_general(
            q_h, ck_h, (((1,), (1,)), ((), ())),
            preferred_element_type=jnp.float32)                     # [S, S]

        # Numerically-stable softmax; normalization deferred past the matmul.
        m = jnp.max(scores, axis=-1, keepdims=True)
        e = jnp.exp((scores - m).astype(exp_dtype))
        l = jnp.sum(e.astype(jnp.float32), axis=-1, keepdims=True)

        ctx = jnp.dot(e.astype(matmul_dtype), v_h,
                      preferred_element_type=jnp.float32)           # [S, dh]
        # Normalize the small [S, dh] context (not the [S, S] probs).
        ctx_parts.append(ctx * pl.reciprocal(l, approx=True))

    # One lane-dense [S, G] store per grid step (no masked per-head stores).
    group_ctx = (ctx_parts[0] if heads_per_group == 1
                 else jnp.concatenate(ctx_parts, axis=-1))
    o_ref[0] = group_ctx.astype(o_ref.dtype)


def prepare_params(wq, bq, wk, bk, wv, bv, num_heads,
                   param_dtype=jnp.bfloat16):
    """One-time parameter packing (outside the hot path).

    torch nn.Linear computes x @ W.T + b.  We store, per head group g,
    [Wq_g^T | Wk_g^T | Wv_g^T] concatenated on the output axis so the kernel
    does a single fused GEMM per (batch, head-group) grid step and only DMAs
    the weight columns it needs.  Weights are stored in `param_dtype` (bf16 by
    default: MXU-native on v5e/v6e/v7x, halves weight DMA/VMEM); biases stay
    f32 and are added after the f32 accumulation."""
    wq = jnp.asarray(wq); wk = jnp.asarray(wk); wv = jnp.asarray(wv)
    bq = jnp.asarray(bq); bk = jnp.asarray(bk); bv = jnp.asarray(bv)

    H = wq.shape[0]
    assert H % num_heads == 0
    head_dim = H // num_heads
    hb = _heads_per_group(num_heads, head_dim)
    num_groups = num_heads // hb
    G = hb * head_dim

    wqt, wkt, wvt = wq.T, wk.T, wv.T
    w_parts, b_parts = [], []
    for g in range(num_groups):
        cols = slice(g * G, (g + 1) * G)
        w_parts += [wqt[:, cols], wkt[:, cols], wvt[:, cols]]
        b_parts += [bq[cols], bk[cols], bv[cols]]
    w_packed = jnp.concatenate(w_parts, axis=1).astype(param_dtype)   # [H, 3H]
    b_packed = jnp.concatenate(b_parts).reshape(1, -1).astype(jnp.float32)

    return dict(w=w_packed, b=b_packed, num_heads=num_heads,
                heads_per_group=hb, head_dim=head_dim)


def bert_self_attention10(hidden_states, params,
                          softmax_exp_dtype=jnp.float32):
    """hidden_states: [B, S, H]; params from prepare_params().

    softmax_exp_dtype=jnp.bfloat16 may be used on v6e/v7x (bf16-capable EUP)
    to roughly double transcendental throughput; keep f32 on v5e."""
    w_packed, b_packed = params["w"], params["b"]
    num_heads = params["num_heads"]
    hb = params["heads_per_group"]
    dh = params["head_dim"]
    B, S, H = hidden_states.shape
    G = hb * dh
    num_groups = num_heads // hb
    inv_dh = 1.0 / math.sqrt(dh)

    kernel = functools.partial(
        _attn_kernel, heads_per_group=hb, head_dim=dh, inv_dh=inv_dh,
        exp_dtype=softmax_exp_dtype)

    w_bytes = w_packed.dtype.itemsize
    x_bytes = hidden_states.dtype.itemsize
    cost = pl.CostEstimate(
        flops=int(B * (2 * S * H * 3 * H          # fused q/k/v projection
                       + 4 * S * S * H            # scores + context, all heads
                       + 16 * S * H)),            # elementwise key combine
        transcendentals=int(B * num_heads * S * (S + 1)),   # exp + reciprocal
        bytes_accessed=int(x_bytes * 2 * B * S * H
                           + w_bytes * 3 * H * H + 4 * 3 * H),
    )

    return pl.pallas_call(
        kernel,
        out_shape=jax.ShapeDtypeStruct((B, S, H), hidden_states.dtype),
        grid_spec=pltpu.PrefetchScalarGridSpec(
            num_scalar_prefetch=0,
            grid=(B, num_groups),
            in_specs=[
                # hidden_states: index constant along g -> the block is reused
                # (no re-DMA) across the head-group axis.
                pl.BlockSpec((1, S, H), lambda b, g: (b, 0, 0)),
                # packed per-group QKV weight / bias.
                pl.BlockSpec((H, 3 * G), lambda b, g: (0, g)),
                pl.BlockSpec((1, 3 * G), lambda b, g: (0, g)),
            ],
            out_specs=pl.BlockSpec((1, S, G), lambda b, g: (b, 0, g)),
        ),
        compiler_params=pltpu.CompilerParams(
            dimension_semantics=("parallel", "parallel"),
            # Above the 16/32 MiB scoped defaults, below v7x's 64 MiB physical
            # VMEM; raise toward ~100 MiB on v5e/v6e for full BERT-base blocks.
            vmem_limit_bytes=48 * 1024 * 1024,
        ),
        cost_estimate=cost,
    )(hidden_states, w_packed, b_packed)


def _reference(hidden, wq, bq, wk, bk, wv, bv, num_heads):
    """Pure-JAX port of BertSelfAttention10.forward (mask=None, eval mode)."""
    B, S, H = hidden.shape
    d = H // num_heads
    dh = math.sqrt(d)

    def split(x):
        return x.reshape(B, S, num_heads, d).transpose(0, 2, 1, 3)

    softsign = lambda t: t / (1.0 + jnp.abs(t))

    q = split(hidden @ wq.T + bq)
    k = split(hidden @ wk.T + bk)
    v = split(hidden @ wv.T + bv)

    left = k / dh
    right = softsign(softsign(k) / dh) + v
    scores = jnp.matmul(q, jnp.swapaxes(left + right, -1, -2)) / dh
    probs = jax.nn.softmax(scores, axis=-1)
    ctx = jnp.matmul(probs, v)
    return ctx.transpose(0, 2, 1, 3).reshape(B, S, H)


if __name__ == "__main__":
    B, S, H, NH = 2, 8, 32, 4

    key = jax.random.PRNGKey(0)
    kx, kwq, kbq, kwk, kbk, kwv, kbv = jax.random.split(key, 7)

    hidden = jax.random.normal(kx, (B, S, H), dtype=jnp.float32)
    bound = 1.0 / math.sqrt(H)    # torch nn.Linear default-ish init scale
    wq = jax.random.uniform(kwq, (H, H), jnp.float32, -bound, bound)
    bq = jax.random.uniform(kbq, (H,), jnp.float32, -bound, bound)
    wk = jax.random.uniform(kwk, (H, H), jnp.float32, -bound, bound)
    bk = jax.random.uniform(kbk, (H,), jnp.float32, -bound, bound)
    wv = jax.random.uniform(kwv, (H, H), jnp.float32, -bound, bound)
    bv = jax.random.uniform(kbv, (H,), jnp.float32, -bound, bound)

    ref = _reference(hidden, wq, bq, wk, bk, wv, bv, NH)

    # Default path: bf16 MXU inputs, f32 accumulation / elementwise math.
    params_bf16 = prepare_params(wq, bq, wk, bk, wv, bv, NH)
    out = jax.block_until_ready(bert_self_attention10(hidden, params_bf16))
    assert out.shape == (B, S, H)
    assert jnp.allclose(out, ref, atol=5e-2, rtol=5e-2), "bf16 path mismatch"

    # f32 path: tight check of the kernel math (only the approx reciprocal in
    # the softmax relaxes the tolerance).
    params_f32 = prepare_params(wq, bq, wk, bk, wv, bv, NH,
                                param_dtype=jnp.float32)
    out32 = jax.block_until_ready(bert_self_attention10(hidden, params_f32))
    assert jnp.allclose(out32, ref, atol=2e-3, rtol=2e-3), "f32 path mismatch"

    print("KERNEL_OK")
</pallas_src>

<mosaic_0001>
module attributes {stable_mosaic.version = 11 : i64} {
  func.func @_attn_kernel(%arg0: i32, %arg1: i32, %arg2: memref<1x8x32xf32, #tpu.memory_space<vmem>>, %arg3: memref<32x96xbf16, #tpu.memory_space<vmem>>, %arg4: memref<1x96xf32, #tpu.memory_space<vmem>>, %arg5: memref<1x8x32xf32, #tpu.memory_space<vmem>>) attributes {dimension_semantics = [#tpu.dimension_semantics<parallel>, #tpu.dimension_semantics<parallel>], iteration_bounds = array<i64: 2, 1>, scalar_prefetch = 0 : i64, scratch_operands = 0 : i64, tpu.core_type = #tpu.core_type<tc>, window_params = [{transform_indices = @transform_0, window_bounds = array<i64: 1, 8, 32>}, {transform_indices = @transform_1, window_bounds = array<i64: 32, 96>}, {transform_indices = @transform_2, window_bounds = array<i64: 1, 96>}, {transform_indices = @transform_3, window_bounds = array<i64: 1, 8, 32>}]} {
    %c0 = arith.constant 0 : index
    %c0_0 = arith.constant 0 : index
    %c0_1 = arith.constant 0 : index
    %0 = vector.load %arg2[%c0, %c0_0, %c0_1] : memref<1x8x32xf32, #tpu.memory_space<vmem>>, vector<1x8x32xf32>
    %1 = vector.shape_cast %0 : vector<1x8x32xf32> to vector<8x32xf32>
    %2 = arith.truncf %1 : vector<8x32xf32> to vector<8x32xbf16>
    %c0_2 = arith.constant 0 : index
    %c0_3 = arith.constant 0 : index
    %3 = vector.load %arg3[%c0_2, %c0_3] : memref<32x96xbf16, #tpu.memory_space<vmem>>, vector<32x96xbf16>
    %cst = arith.constant dense<0.000000e+00> : vector<8x96xf32>
    %4 = tpu.matmul %2, %3, %cst {dimension_numbers = #tpu.dot_dimension_numbers<[1], [0], [0], [1], [0, 0, 1, 1], [], []>} : vector<8x32xbf16>, vector<32x96xbf16>, vector<8x96xf32> -> vector<8x96xf32>
    %c0_4 = arith.constant 0 : index
    %c0_5 = arith.constant 0 : index
    %5 = vector.load %arg4[%c0_4, %c0_5] : memref<1x96xf32, #tpu.memory_space<vmem>>, vector<1x96xf32>
    %6 = vector.broadcast %5 : vector<1x96xf32> to vector<8x96xf32>
    %7 = arith.addf %4, %6 : vector<8x96xf32>
    %8 = vector.extract_strided_slice %7 {offsets = [0, 0], sizes = [8, 32], strides = [1, 1]} : vector<8x96xf32> to vector<8x32xf32>
    %9 = vector.extract_strided_slice %7 {offsets = [0, 32], sizes = [8, 32], strides = [1, 1]} : vector<8x96xf32> to vector<8x32xf32>
    %10 = vector.extract_strided_slice %7 {offsets = [0, 64], sizes = [8, 32], strides = [1, 1]} : vector<8x96xf32> to vector<8x32xf32>
    %cst_6 = arith.constant 0.353553385 : f32
    %11 = vector.broadcast %cst_6 : f32 to vector<8x32xf32>
    %12 = arith.mulf %9, %11 : vector<8x32xf32>
    %13 = math.absf %9 : vector<8x32xf32>
    %cst_7 = arith.constant 1.000000e+00 : f32
    %14 = vector.broadcast %cst_7 : f32 to vector<8x32xf32>
    %15 = arith.addf %14, %13 : vector<8x32xf32>
    %16 = arith.divf %9, %15 : vector<8x32xf32>
    %cst_8 = arith.constant 0.353553385 : f32
    %17 = vector.broadcast %cst_8 : f32 to vector<8x32xf32>
    %18 = arith.mulf %16, %17 : vector<8x32xf32>
    %19 = math.absf %18 : vector<8x32xf32>
    %cst_9 = arith.constant 1.000000e+00 : f32
    %20 = vector.broadcast %cst_9 : f32 to vector<8x32xf32>
    %21 = arith.addf %20, %19 : vector<8x32xf32>
    %22 = arith.divf %18, %21 : vector<8x32xf32>
    %23 = arith.addf %12, %22 : vector<8x32xf32>
    %24 = arith.addf %23, %10 : vector<8x32xf32>
    %cst_10 = arith.constant 0.353553385 : f32
    %25 = vector.broadcast %cst_10 : f32 to vector<8x32xf32>
    %26 = arith.mulf %24, %25 : vector<8x32xf32>
    %27 = arith.truncf %8 : vector<8x32xf32> to vector<8x32xbf16>
    %28 = arith.truncf %26 : vector<8x32xf32> to vector<8x32xbf16>
    %29 = arith.truncf %10 : vector<8x32xf32> to vector<8x32xbf16>
    %30 = vector.extract_strided_slice %27 {offsets = [0, 0], sizes = [8, 8], strides = [1, 1]} : vector<8x32xbf16> to vector<8x8xbf16>
    %31 = vector.extract_strided_slice %28 {offsets = [0, 0], sizes = [8, 8], strides = [1, 1]} : vector<8x32xbf16> to vector<8x8xbf16>
    %32 = vector.extract_strided_slice %29 {offsets = [0, 0], sizes = [8, 8], strides = [1, 1]} : vector<8x32xbf16> to vector<8x8xbf16>
    %cst_11 = arith.constant dense<0.000000e+00> : vector<8x8xf32>
    %33 = tpu.matmul %30, %31, %cst_11 {dimension_numbers = #tpu.dot_dimension_numbers<[1], [1], [0], [0], [0, 0, 1, 0], [], []>} : vector<8x8xbf16>, vector<8x8xbf16>, vector<8x8xf32> -> vector<8x8xf32>
    %cst_12 = arith.constant dense<0xFF800000> : vector<8xf32>
    %34 = vector.multi_reduction <maximumf>, %33, %cst_12 [1] : vector<8x8xf32> to vector<8xf32>
    %35 = vector.shape_cast %34 : vector<8xf32> to vector<8x1xf32>
    %36 = vector.broadcast %35 : vector<8x1xf32> to vector<8x8xf32>
    %37 = arith.subf %33, %36 : vector<8x8xf32>
    %38 = math.exp %37 : vector<8x8xf32>
    %cst_13 = arith.constant dense<0.000000e+00> : vector<8xf32>
    %39 = vector.multi_reduction <add>, %38, %cst_13 [1] : vector<8x8xf32> to vector<8xf32>
    %40 = vector.shape_cast %39 : vector<8xf32> to vector<8x1xf32>
    %41 = arith.truncf %38 : vector<8x8xf32> to vector<8x8xbf16>
    %cst_14 = arith.constant dense<0.000000e+00> : vector<8x8xf32>
    %42 = tpu.matmul %41, %32, %cst_14 {dimension_numbers = #tpu.dot_dimension_numbers<[1], [0], [0], [1], [0, 0, 1, 1], [], []>} : vector<8x8xbf16>, vector<8x8xbf16>, vector<8x8xf32> -> vector<8x8xf32>
    %43 = tpu.reciprocal %40 {approx = true} : vector<8x1xf32> -> vector<8x1xf32>
    %44 = vector.broadcast %43 : vector<8x1xf32> to vector<8x8xf32>
    %45 = arith.mulf %42, %44 : vector<8x8xf32>
    %46 = vector.extract_strided_slice %27 {offsets = [0, 8], sizes = [8, 8], strides = [1, 1]} : vector<8x32xbf16> to vector<8x8xbf16>
    %47 = vector.extract_strided_slice %28 {offsets = [0, 8], sizes = [8, 8], strides = [1, 1]} : vector<8x32xbf16> to vector<8x8xbf16>
    %48 = vector.extract_strided_slice %29 {offsets = [0, 8], sizes = [8, 8], strides = [1, 1]} : vector<8x32xbf16> to vector<8x8xbf16>
    %cst_15 = arith.constant dense<0.000000e+00> : vector<8x8xf32>
    %49 = tpu.matmul %46, %47, %cst_15 {dimension_numbers = #tpu.dot_dimension_numbers<[1], [1], [0], [0], [0, 0, 1, 0], [], []>} : vector<8x8xbf16>, vector<8x8xbf16>, vector<8x8xf32> -> vector<8x8xf32>
    %cst_16 = arith.constant dense<0xFF800000> : vector<8xf32>
    %50 = vector.multi_reduction <maximumf>, %49, %cst_16 [1] : vector<8x8xf32> to vector<8xf32>
    %51 = vector.shape_cast %50 : vector<8xf32> to vector<8x1xf32>
    %52 = vector.broadcast %51 : vector<8x1xf32> to vector<8x8xf32>
    %53 = arith.subf %49, %52 : vector<8x8xf32>
    %54 = math.exp %53 : vector<8x8xf32>
    %cst_17 = arith.constant dense<0.000000e+00> : vector<8xf32>
    %55 = vector.multi_reduction <add>, %54, %cst_17 [1] : vector<8x8xf32> to vector<8xf32>
    %56 = vector.shape_cast %55 : vector<8xf32> to vector<8x1xf32>
    %57 = arith.truncf %54 : vector<8x8xf32> to vector<8x8xbf16>
    %cst_18 = arith.constant dense<0.000000e+00> : vector<8x8xf32>
    %58 = tpu.matmul %57, %48, %cst_18 {dimension_numbers = #tpu.dot_dimension_numbers<[1], [0], [0], [1], [0, 0, 1, 1], [], []>} : vector<8x8xbf16>, vector<8x8xbf16>, vector<8x8xf32> -> vector<8x8xf32>
    %59 = tpu.reciprocal %56 {approx = true} : vector<8x1xf32> -> vector<8x1xf32>
    %60 = vector.broadcast %59 : vector<8x1xf32> to vector<8x8xf32>
    %61 = arith.mulf %58, %60 : vector<8x8xf32>
    %62 = vector.extract_strided_slice %27 {offsets = [0, 16], sizes = [8, 8], strides = [1, 1]} : vector<8x32xbf16> to vector<8x8xbf16>
    %63 = vector.extract_strided_slice %28 {offsets = [0, 16], sizes = [8, 8], strides = [1, 1]} : vector<8x32xbf16> to vector<8x8xbf16>
    %64 = vector.extract_strided_slice %29 {offsets = [0, 16], sizes = [8, 8], strides = [1, 1]} : vector<8x32xbf16> to vector<8x8xbf16>
    %cst_19 = arith.constant dense<0.000000e+00> : vector<8x8xf32>
    %65 = tpu.matmul %62, %63, %cst_19 {dimension_numbers = #tpu.dot_dimension_numbers<[1], [1], [0], [0], [0, 0, 1, 0], [], []>} : vector<8x8xbf16>, vector<8x8xbf16>, vector<8x8xf32> -> vector<8x8xf32>
    %cst_20 = arith.constant dense<0xFF800000> : vector<8xf32>
    %66 = vector.multi_reduction <maximumf>, %65, %cst_20 [1] : vector<8x8xf32> to vector<8xf32>
    %67 = vector.shape_cast %66 : vector<8xf32> to vector<8x1xf32>
    %68 = vector.broadcast %67 : vector<8x1xf32> to vector<8x8xf32>
    %69 = arith.subf %65, %68 : vector<8x8xf32>
    %70 = math.exp %69 : vector<8x8xf32>
    %cst_21 = arith.constant dense<0.000000e+00> : vector<8xf32>
    %71 = vector.multi_reduction <add>, %70, %cst_21 [1] : vector<8x8xf32> to vector<8xf32>
    %72 = vector.shape_cast %71 : vector<8xf32> to vector<8x1xf32>
    %73 = arith.truncf %70 : vector<8x8xf32> to vector<8x8xbf16>
    %cst_22 = arith.constant dense<0.000000e+00> : vector<8x8xf32>
    %74 = tpu.matmul %73, %64, %cst_22 {dimension_numbers = #tpu.dot_dimension_numbers<[1], [0], [0], [1], [0, 0, 1, 1], [], []>} : vector<8x8xbf16>, vector<8x8xbf16>, vector<8x8xf32> -> vector<8x8xf32>
    %75 = tpu.reciprocal %72 {approx = true} : vector<8x1xf32> -> vector<8x1xf32>
    %76 = vector.broadcast %75 : vector<8x1xf32> to vector<8x8xf32>
    %77 = arith.mulf %74, %76 : vector<8x8xf32>
    %78 = vector.extract_strided_slice %27 {offsets = [0, 24], sizes = [8, 8], strides = [1, 1]} : vector<8x32xbf16> to vector<8x8xbf16>
    %79 = vector.extract_strided_slice %28 {offsets = [0, 24], sizes = [8, 8], strides = [1, 1]} : vector<8x32xbf16> to vector<8x8xbf16>
    %80 = vector.extract_strided_slice %29 {offsets = [0, 24], sizes = [8, 8], strides = [1, 1]} : vector<8x32xbf16> to vector<8x8xbf16>
    %cst_23 = arith.constant dense<0.000000e+00> : vector<8x8xf32>
    %81 = tpu.matmul %78, %79, %cst_23 {dimension_numbers = #tpu.dot_dimension_numbers<[1], [1], [0], [0], [0, 0, 1, 0], [], []>} : vector<8x8xbf16>, vector<8x8xbf16>, vector<8x8xf32> -> vector<8x8xf32>
    %cst_24 = arith.constant dense<0xFF800000> : vector<8xf32>
    %82 = vector.multi_reduction <maximumf>, %81, %cst_24 [1] : vector<8x8xf32> to vector<8xf32>
    %83 = vector.shape_cast %82 : vector<8xf32> to vector<8x1xf32>
    %84 = vector.broadcast %83 : vector<8x1xf32> to vector<8x8xf32>
    %85 = arith.subf %81, %84 : vector<8x8xf32>
    %86 = math.exp %85 : vector<8x8xf32>
    %cst_25 = arith.constant dense<0.000000e+00> : vector<8xf32>
    %87 = vector.multi_reduction <add>, %86, %cst_25 [1] : vector<8x8xf32> to vector<8xf32>
    %88 = vector.shape_cast %87 : vector<8xf32> to vector<8x1xf32>
    %89 = arith.truncf %86 : vector<8x8xf32> to vector<8x8xbf16>
    %cst_26 = arith.constant dense<0.000000e+00> : vector<8x8xf32>
    %90 = tpu.matmul %89, %80, %cst_26 {dimension_numbers = #tpu.dot_dimension_numbers<[1], [0], [0], [1], [0, 0, 1, 1], [], []>} : vector<8x8xbf16>, vector<8x8xbf16>, vector<8x8xf32> -> vector<8x8xf32>
    %91 = tpu.reciprocal %88 {approx = true} : vector<8x1xf32> -> vector<8x1xf32>
    %92 = vector.broadcast %91 : vector<8x1xf32> to vector<8x8xf32>
    %93 = arith.mulf %90, %92 : vector<8x8xf32>
    %94 = tpu.concatenate %45, %61, %77, %93 in 1 : vector<8x8xf32>, vector<8x8xf32>, vector<8x8xf32>, vector<8x8xf32> -> vector<8x32xf32>
    %c0_27 = arith.constant 0 : index
    %c0_28 = arith.constant 0 : index
    %c0_29 = arith.constant 0 : index
    %95 = vector.load %arg5[%c0_27, %c0_28, %c0_29] : memref<1x8x32xf32, #tpu.memory_space<vmem>>, vector<1x8x32xf32>
    %96 = vector.shape_cast %95 : vector<1x8x32xf32> to vector<8x32xf32>
    %97 = vector.shape_cast %94 : vector<8x32xf32> to vector<1x8x32xf32>
    tpu.vector_store %arg5[%c0_27, %c0_28, %c0_29], %97 {strides = array<i32>} : memref<1x8x32xf32, #tpu.memory_space<vmem>>, vector<1x8x32xf32>,
    return
  }
  func.func @transform_0(%arg0: i32, %arg1: i32) -> (i32, i32, i32) {
    %c0_i32 = arith.constant 0 : i32
    %c0_i32_0 = arith.constant 0 : i32
    %c0_i32_1 = arith.constant 0 : i32
    return %arg0, %c0_i32, %c0_i32_0 : i32, i32, i32
  }
  func.func @transform_1(%arg0: i32, %arg1: i32) -> (i32, i32) {
    %c0_i32 = arith.constant 0 : i32
    %c0_i32_0 = arith.constant 0 : i32
    return %c0_i32, %arg1 : i32, i32
  }
  func.func @transform_2(%arg0: i32, %arg1: i32) -> (i32, i32) {
    %c0_i32 = arith.constant 0 : i32
    %c0_i32_0 = arith.constant 0 : i32
    return %c0_i32, %arg1 : i32, i32
  }
  func.func @transform_3(%arg0: i32, %arg1: i32) -> (i32, i32, i32) {
    %c0_i32 = arith.constant 0 : i32
    %c0_i32_0 = arith.constant 0 : i32
    return %arg0, %c0_i32, %arg1 : i32, i32, i32
  }
}

</mosaic_0001>

<llo_original>
// kernel: tpu_custom_call.1
$region0: #{tpu_custom_call.1}
  #allocation0 [shape = 'u32[]', space=smem, size = 0x4, offset = 0x4, fixed_abs, tag = 'smem constant byte address 0x4 - core index']
  #allocation1 [shape = 'u32[72,128]{1,0:T(1,128)}', space=vmem, size = 0x9000, scoped, tag = 'internal scratch']
  %s0 = inlined_call_operand.hbm [shape: f32[2,8,32], index: 0, kind: input, shape index: {}]
  %s1 = inlined_call_operand.hbm [shape: bf16[32,96], index: 1, kind: input, shape index: {}]
  %s2 = inlined_call_operand.vmem [shape: f32[1,96], index: 2, kind: input, shape index: {}]
  %s3 = inlined_call_operand.hbm [shape: f32[2,8,32], index: 3, kind: output, shape index: {}]
  %s4 = sld [smem:[#allocation0]]
  $region53: #{tpu_custom_call.1} parent=0
    _
  %s6 = ssub.s32 1, %s4
  %s7 = scalar_select 0, %s6, %s4
  $region1: #{tpu_custom_call.1} parent=0
    #allocation2 [shape = 'u8[8192]{0}', space=vmem, size = 0x2000, scoped, tag = 'input window, operand 0']
    #allocation3 [shape = 's32[2]{0}', space=sflag, size = 0x8, scoped, tag = 'scoped memory for tpu_custom_call.1']
    #allocation4 [shape = 's32[2]{0}', space=sflag, size = 0x8, scoped, tag = 'scoped memory for tpu_custom_call.1']
    #allocation5 [shape = 'u8[8192]{0}', space=vmem, size = 0x2000, scoped, tag = 'input window, operand 1, single buffered']
    #allocation6 [shape = 's32[1]{0}', space=sflag, size = 0x4, scoped, tag = 'scoped memory for tpu_custom_call.1']
    #allocation7 [shape = 'u8[8192]{0}', space=vmem, size = 0x2000, scoped, tag = 'output window, operand 0']
    %8 = vsyncpa [#allocation3], 0
    %s9 = scalar_lea.sflag [#allocation3], 1
    %10 = vsyncpa %s9, 0
    %11 = vsyncpa [#allocation6], 0
    %12 = vsyncpa [#allocation4], 0
    %s13 = scalar_lea.sflag [#allocation4], 1
    %14 = vsyncpa %s13, 0
    loop: start=0, step=1, limit=4
    $region2: #{tpu_custom_call.1} parent=1 // loop_pre_header
      _
    $region3: #{tpu_custom_call.1} parent=1 // loop_header
      %s16 = sphi 0, %s20
      %p17 = scmp.ge.s32.totalorder %s16, 4
      %s23 = sphi 0, %s35
      %s24 = sphi 0, %s31
      %s25 = sphi 0, %s23
      %s26 = sphi 0, %s24
      %s27 = sphi 0, %s25
      %s28 = sphi 0, %s26
      %s38 = sphi 0, %s40
      %s41 = sphi 0, %s38
      %s42 = sphi 0, %s41
      %s58 = sphi 0, %s42
      %s64 = sphi 0, %s66
      %s67 = sphi 0, %s64
      %s68 = sphi 0, %s67
      %s84 = sphi 0, %s68
      %s90 = sphi 0, %s92
      %s93 = sphi 0, %s90
      %s94 = sphi 0, %s93
      %s110 = sphi 0, %s94
      %s118 = sphi 0, %s120
      %s121 = sphi 0, %s118
      %s122 = sphi 0, %s121
      %s138 = sphi 0, %s122
    $region4: #{tpu_custom_call.1} parent=1 // loop_header_branch
      %19 = sbr.rel (%p17) target = $region8
    $region5: #{tpu_custom_call.1} parent=1 // loop_body
      %s21 = ssub.s32 %s16, 1
      %s22 = ssub.s32 %s16, 2
      %s29 = sadd.s32 1, %s24
      %p30 = scmp.ge.s32.totalorder %s29, 1
      %s31 = scalar_select %p30, 0, %s29
      %s32 = sadd.s32 1, %s23
      %s33 = scalar_select %p30, %s32, %s23
      %p34 = scmp.ge.s32.totalorder %s33, 2
      %s35 = scalar_select %p34, 0, %s33
      %s36 = ssub.s32 %s23, %s35
      %p37 = scmp.eq.s32.totalorder %s36, 0
      %s39 = sadd.s32 %s38, 1
      %s40 = scalar_select %p37, %s38, %s39
      %p43 = pneg %p37
      %p44 = scmp.eq.s32.totalorder %s16, 1
      %p45 = por %p43, %p44
      %p46 = scmp.ne.s32.totalorder %s38, %s41
      %p47 = scmp.eq.s32.totalorder %s16, 0
      %p48 = por %p46, %p47
      %p49 = scmp.ne.s32.totalorder %s38, %s41
      %p50 = scmp.eq.s32.totalorder %s21, 1
      %p51 = por %p49, %p50
      %p52 = scmp.ne.s32.totalorder %s41, %s42
      %p53 = scmp.eq.s32.totalorder %s21, 0
      %p54 = por %p52, %p53
      %p55 = scmp.ne.s32.totalorder %s41, %s42
      %p56 = scmp.eq.s32.totalorder %s22, 1
      %p57 = por %p55, %p56
      %p59 = scmp.ne.s32.totalorder %s42, %s58
      %p60 = scmp.eq.s32.totalorder %s22, 0
      %p61 = por %p59, %p60
      %s62 = ssub.s32 %s24, %s31
      %p63 = scmp.eq.s32.totalorder %s62, 0
      %s65 = sadd.s32 %s64, 1
      %s66 = scalar_select %p63, %s64, %s65
      %p69 = pneg %p63
      %p70 = scmp.eq.s32.totalorder %s16, 1
      %p71 = por %p69, %p70
      %p72 = scmp.ne.s32.totalorder %s64, %s67
      %p73 = scmp.eq.s32.totalorder %s16, 0
      %p74 = por %p72, %p73
      %p75 = scmp.ne.s32.totalorder %s64, %s67
      %p76 = scmp.eq.s32.totalorder %s21, 1
      %p77 = por %p75, %p76
      %p78 = scmp.ne.s32.totalorder %s67, %s68
      %p79 = scmp.eq.s32.totalorder %s21, 0
      %p80 = por %p78, %p79
      %p81 = scmp.ne.s32.totalorder %s67, %s68
      %p82 = scmp.eq.s32.totalorder %s22, 1
      %p83 = por %p81, %p82
      %p85 = scmp.ne.s32.totalorder %s68, %s84
      %p86 = scmp.eq.s32.totalorder %s22, 0
      %p87 = por %p85, %p86
      %s88 = ssub.s32 %s24, %s31
      %p89 = scmp.eq.s32.totalorder %s88, 0
      %s91 = sadd.s32 %s90, 1
      %s92 = scalar_select %p89, %s90, %s91
      %p95 = pneg %p89
      %p96 = scmp.eq.s32.totalorder %s16, 1
      %p97 = por %p95, %p96
      %p98 = scmp.ne.s32.totalorder %s90, %s93
      %p99 = scmp.eq.s32.totalorder %s16, 0
      %p100 = por %p98, %p99
      %p101 = scmp.ne.s32.totalorder %s90, %s93
      %p102 = scmp.eq.s32.totalorder %s21, 1
      %p103 = por %p101, %p102
      %p104 = scmp.ne.s32.totalorder %s93, %s94
      %p105 = scmp.eq.s32.totalorder %s21, 0
      %p106 = por %p104, %p105
      %p107 = scmp.ne.s32.totalorder %s93, %s94
      %p108 = scmp.eq.s32.totalorder %s22, 1
      %p109 = por %p107, %p108
      %p111 = scmp.ne.s32.totalorder %s94, %s110
      %p112 = scmp.eq.s32.totalorder %s22, 0
      %p113 = por %p111, %p112
      %s114 = ssub.s32 %s23, %s35
      %s115 = ssub.s32 %s24, %s31
      %s116 = sor.u32 %s114, %s115
      %p117 = scmp.eq.s32.totalorder %s116, 0
      %s119 = sadd.s32 %s118, 1
      %s120 = scalar_select %p117, %s118, %s119
      %p123 = pneg %p117
      %p124 = scmp.eq.s32.totalorder %s16, 1
      %p125 = por %p123, %p124
      %p126 = scmp.ne.s32.totalorder %s118, %s121
      %p127 = scmp.eq.s32.totalorder %s16, 0
      %p128 = por %p126, %p127
      %p129 = scmp.ne.s32.totalorder %s118, %s121
      %p130 = scmp.eq.s32.totalorder %s21, 1
      %p131 = por %p129, %p130
      %p132 = scmp.ne.s32.totalorder %s121, %s122
      %p133 = scmp.eq.s32.totalorder %s21, 0
      %p134 = por %p132, %p133
      %p135 = scmp.ne.s32.totalorder %s121, %s122
      %p136 = scmp.eq.s32.totalorder %s22, 1
      %p137 = por %p135, %p136
      %p139 = scmp.ne.s32.totalorder %s122, %s138
      %p140 = scmp.eq.s32.totalorder %s22, 0
      %p141 = por %p139, %p140
      %p142 = scmp.le.s32.totalorder 1, %s16
      %p143 = scmp.lt.s32.totalorder %s16, 3
      %p144 = pnand %p142, %p143
      %p145 = pneg %p144
      // Predicated region
      $region9: #{tpu_custom_call.1} parent=5 // pred_check
        _
      $region10: #{tpu_custom_call.1} parent=5 // pred_check_branch
        %147 = sbr.rel (%p144) target = $region12
      $region11: #{tpu_custom_call.1} parent=5 // pred_region
        %s148 = ssub.s32 %s16, 1
        // Predicated region
        $region13: #{tpu_custom_call.1} parent=11 // pred_check
          %p149 = pneg %p80
        $region14: #{tpu_custom_call.1} parent=11 // pred_check_branch
          %151 = sbr.rel (%p149) target = $region16
        $region15: #{tpu_custom_call.1} parent=11 // pred_region
          %153 = vsyncadd [#allocation6], 0
          %s154 = smul.addr %s26, 4
          %s155 = scalar_lea.hbm %s1, %s154
          %s156 = sshll.u32 %s155, 4
          %s157 = int_to_ptr.hbm [resolvable:$true] %s156
          %s158 = sshll.u32 [#allocation5], 4
          %s159 = int_to_ptr.vmem [resolvable:$true] %s158
          %164 = dma.hbm_to_vmem [thread:$0]  %s157, 256, %s159, [#allocation6], 64, 64, 4
        $region16: #{tpu_custom_call.1} parent=11 // pred_fallthru
          _
        // Predicated region
        $region17: #{tpu_custom_call.1} parent=11 // pred_check
          %p165 = pneg %p106
        $region18: #{tpu_custom_call.1} parent=11 // pred_check_branch
          %167 = sbr.rel (%p165) target = $region20
        $region19: #{tpu_custom_call.1} parent=11 // pred_region
          %p168 = scmp.lt.s32.totalorder %s26, 0
          %s169 = scalar_select %p168, %s26, 0
          %s170 = scalar_lea.vmem %s2, %s169
        $region20: #{tpu_custom_call.1} parent=11 // pred_fallthru
          _
      $region12: #{tpu_custom_call.1} parent=5 // pred_fallthru
        _
      %p171 = scmp.lt.s32.totalorder %s16, 2
      // Predicated region
      $region21: #{tpu_custom_call.1} parent=5 // pred_check
        %p172 = pneg %p171
      $region22: #{tpu_custom_call.1} parent=5 // pred_check_branch
        %174 = sbr.rel (%p172) target = $region24
      $region23: #{tpu_custom_call.1} parent=5 // pred_region
        // Predicated region
        $region25: #{tpu_custom_call.1} parent=23 // pred_check
          %p175 = pneg %p48
        $region26: #{tpu_custom_call.1} parent=23 // pred_check_branch
          %177 = sbr.rel (%p175) target = $region28
        $region27: #{tpu_custom_call.1} parent=23 // pred_region
          %s178 = sand.u32 %s38, 1
          %s179 = scalar_lea.sflag [#allocation3], %s178
          %s180 = sand.u32 %s38, 1
          %s181 = smul.addr %s180, 8
          %s182 = scalar_lea.vmem [#allocation2], %s181
          %184 = vsyncadd %s179, 0
          %s185 = smul.addr %s23, 8
          %s186 = scalar_lea.hbm %s0, %s185
          %s188 = sshll.u32 %s186, 4
          %s189 = int_to_ptr.hbm [resolvable:$true] %s188
          %s190 = sshll.u32 %s182, 4
          %s191 = int_to_ptr.vmem [resolvable:$true] %s190
          %193 = dma.hbm_to_vmem [thread:$0]  %s189, 128, %s191, %s179
        $region28: #{tpu_custom_call.1} parent=23 // pred_fallthru
          _
      $region24: #{tpu_custom_call.1} parent=5 // pred_fallthru
        _
      %p194 = scmp.le.s32.totalorder 1, %s16
      %p195 = scmp.lt.s32.totalorder %s16, 3
      %p196 = pnand %p194, %p195
      %p197 = pneg %p196
      // Predicated region
      $region29: #{tpu_custom_call.1} parent=5 // pred_check
        _
      $region30: #{tpu_custom_call.1} parent=5 // pred_check_branch
        %199 = sbr.rel (%p196) target = $region32
      $region31: #{tpu_custom_call.1} parent=5 // pred_region
        %s200 = ssub.s32 %s16, 1
        %s201 = sand.u32 %s41, 1
        %s202 = scalar_lea.sflag [#allocation3], %s201
        %s203 = sand.u32 %s41, 1
        %s204 = smul.addr %s203, 8
        %s205 = scalar_lea.vmem [#allocation2], %s204
        // Predicated region
        $region33: #{tpu_custom_call.1} parent=31 // pred_check
          %p206 = pneg %p54
        $region34: #{tpu_custom_call.1} parent=31 // pred_check_branch
          %208 = sbr.rel (%p206) target = $region36
        $region35: #{tpu_custom_call.1} parent=31 // pred_region
          %210 = dma.done %s202, 128
        $region36: #{tpu_custom_call.1} parent=31 // pred_fallthru
          _
        // Predicated region
        $region37: #{tpu_custom_call.1} parent=31 // pred_check
          %p211 = pneg %p80
        $region38: #{tpu_custom_call.1} parent=31 // pred_check_branch
          %213 = sbr.rel (%p211) target = $region40
        $region39: #{tpu_custom_call.1} parent=31 // pred_region
          %215 = dma.done [#allocation6], 256
        $region40: #{tpu_custom_call.1} parent=31 // pred_fallthru
          _
        %s216 = sand.u32 %s41, 1
        %s217 = scalar_lea.sflag [#allocation3], %s216
        %s218 = sand.u32 %s41, 1
        %s219 = smul.addr %s218, 8
        %s220 = scalar_lea.vmem [#allocation2], %s219
        %p221 = pneg %p54
        %p222 = pneg %p51
        %p223 = pneg %p80
        %p224 = pneg %p77
        %p225 = scmp.lt.s32.totalorder %s26, 0
        %s226 = scalar_select %p225, %s26, 0
        %s227 = scalar_lea.vmem %s2, %s226
        %p228 = pneg %p106
        %p229 = pneg %p103
        %p230 = pneg %p134
        %p231 = pneg %p131
        %s232 = sand.u32 %s121, 1
        %s233 = scalar_lea.sflag [#allocation4], %s232
        %s234 = sand.u32 %s121, 1
        %s235 = smul.addr %s234, 8
        %s236 = scalar_lea.vmem [#allocation7], %s235
        %p237 = scmp.lt.s32.totalorder %s26, 0
        %s238 = scalar_select %p237, %s26, 0
        %s239 = scalar_lea.vmem %s2, %s238
        %v241 = vld [vmem:[%s205] sm:$0xff]
        %v242 = vpack.c.bf16 %v241, %v241
        %v243 = vld [vmem:[#allocation5] sm:$0xf]
        %v244 = vld [vmem:[#allocation5 + $0x4] sm:$0xf]
        %v245 = vld [vmem:[#allocation5 + $0x8] sm:$0xf]
        %v246 = vld [vmem:[#allocation5 + $0xc] sm:$0xf]
        %v247 = vld [vmem:[%s239] sm:$0x1]
        %v249 = vperm.slane %v247, 0
        %v255 = vunpack.c.l.b16 %v243
        %v256 = vunpack.c.l.b16 %v244
        %v257 = vunpack.c.l.b16 %v245
        %v258 = vunpack.c.l.b16 %v246
        %v259 = vpack.c.b16 %v256, %v255
        %v260 = vpack.c.b16 %v258, %v257
        %vm263 = vcmask 261120
        %v265 = vsel %vm263, %v242, 0
        %267 = vmatpush.bf16.msra.mxu0 0
        %268 = vmatpush.bf16.msra.mxu0 0
        %269 = vmatpush.bf16.msra.mxu0 0
        %270 = vmatpush.bf16.msra.mxu0 0
        %271 = vmatpush.bf16.msra.mxu0 0
        %272 = vmatpush.bf16.msra.mxu0 0
        %273 = vmatpush.bf16.msra.mxu0 %v260
        %274 = vmatpush.bf16.msra.mxu0 %v259
        %275 = vmatmul.bf16.gmra.mxu0 %v265
        %v276 = vpop.f32.mrf.mxu0
        %v277 = vadd.f32 %v249, %v276
        %v278 = vpop.f32.mrf.mxu0
        %279 = vdwg.mxu0
        %v280 = vmul.f32 %v277, 0.35355338
        %v281 = vand.u32 2147483647, %v277
        %v282 = vadd.f32 %v281, 1.0
        %v283 = vrcp.pop %v282
        %v284 = vmul.f32 %v282, %v283
        %v285 = vsub.f32 1.0, %v284
        %v286 = vmul.f32 %v283, %v285
        %v287 = vadd.f32 %v283, %v286
        %vm288 = vweird.f32 %v282
        %vm289 = vweird.f32 %v283
        %vm290 = vmor %vm288, %vm289
        %v291 = vsel %vm290, %v283, %v287
        %v292 = vand.u32 2147483647, %v282
        %vm293 = vcmp.eq.f32.partialorder %v292, 8.507059e+37
        %v294 = vand.u32 %v282, 2147483648
        %v295 = vor.u32 1.1754944e-38, %v294
        %v296 = vsel %vm293, %v295, %v291
        %v297 = vmul.f32 %v277, %v296
        %v298 = vmul.f32 %v297, 0.35355338
        %v299 = vand.u32 2147483647, %v298
        %v300 = vadd.f32 %v299, 1.0
        %v301 = vrcp.pop %v300
        %v302 = vmul.f32 %v300, %v301
        %v303 = vsub.f32 1.0, %v302
        %v304 = vmul.f32 %v301, %v303
        %v305 = vadd.f32 %v301, %v304
        %vm306 = vweird.f32 %v300
        %vm307 = vweird.f32 %v301
        %vm308 = vmor %vm306, %vm307
        %v309 = vsel %vm308, %v301, %v305
        %v310 = vand.u32 2147483647, %v300
        %vm311 = vcmp.eq.f32.partialorder %v310, 8.507059e+37
        %v312 = vand.u32 %v300, 2147483648
        %v313 = vor.u32 1.1754944e-38, %v312
        %v314 = vsel %vm311, %v313, %v309
        %v315 = vmul.f32 %v298, %v314
        %v316 = vadd.f32 %v280, %v315
        %318 = vrot.lane.b32.xlu0 %v277, 96
        %v319 = vpop.permute.xlu0 %318
        %v321 = vadd.f32 %v316, %v319
        %v322 = vmul.f32 %v321, 0.35355338
        %v323 = vpack.c.bf16 %v277, %v277
        %v324 = vpack.c.bf16 %v322, %v322
        %v326 = vunpack.c.l.b16 %v324
        %v327 = vpack.c.b16 %v326, %v326
        %328 = vrot.lane.b32.xlu0 %v327, 96
        %v329 = vpop.permute.xlu0 %328
        %vm330 = vcmask 64512
        %v332 = vsel %vm330, %v323, 0
        %v335 = vsel %vm330, %v329, 0
        %337 = vmatpush.bf16.xpose.msra.mxu0 0
        %338 = vmatpush.bf16.xpose.msra.mxu0 0
        %339 = vmatpush.bf16.xpose.msra.mxu0 0
        %340 = vmatpush.bf16.xpose.msra.mxu0 0
        %341 = vmatpush.bf16.xpose.msra.mxu0 0
        %342 = vmatpush.bf16.xpose.msra.mxu0 0
        %343 = vmatpush.bf16.xpose.msra.mxu0 0
        %344 = vmatpush.bf16.xpose.msra.mxu0 %v335
        %345 = vmatmul.bf16.gmra.mxu0 %v332
        %v346 = vpop.f32.mrf.mxu0
        %v347 = vadd.f32 0.0, %v346
        %v348 = vpop.f32.mrf.mxu0
        %349 = vdwg.mxu0
        %v350 = vsel %vm330, %v347, -inf
        %351 = vmax.xlane.f32.xlu0 %v350
        %v352 = vpop.xlane.xlu0 %351
        %v353 = vsub.f32 %v347, %v352
        %v354 = vmul.f32 %v353, 1.442695
        %v355 = vpow.pop %v354
        %v356 = vsel %vm330, %v355, 0.0
        %357 = vadd.xlane.f32.xlu0 %v356
        %v358 = vpop.xlane.xlu0 %357
        %v359 = vpack.c.bf16 %v355, %v355
        %v361 = vunpack.c.l.b16 %v323
        %v362 = vpack.c.b16 %v361, %v361
        %363 = vrot.lane.b32.xlu0 %v362, 64
        %v364 = vpop.permute.xlu0 %363
        %v366 = vsel %vm330, %v359, 0
        %vm368 = vcmask 1043456
        %v370 = vsel %vm368, %v364, 0
        %372 = vmatpush.bf16.msra.mxu0 0
        %373 = vmatpush.bf16.msra.mxu0 0
        %374 = vmatpush.bf16.msra.mxu0 0
        %375 = vmatpush.bf16.msra.mxu0 0
        %376 = vmatpush.bf16.msra.mxu0 0
        %377 = vmatpush.bf16.msra.mxu0 0
        %378 = vmatpush.bf16.msra.mxu0 0
        %379 = vmatpush.bf16.msra.mxu0 %v370
        %380 = vmatmul.bf16.gmra.mxu0 %v366
        %v381 = vpop.f32.mrf.mxu0
        %v382 = vadd.f32 0.0, %v381
        %v383 = vpop.f32.mrf.mxu0
        %384 = vdwg.mxu0
        %v385 = vrcp.pop %v358
        %v386 = vmul.f32 %v382, %v385
        %387 = vrot.lane.b32.xlu0 %v362, 120
        %v388 = vpop.permute.xlu0 %387
        %389 = vrot.lane.b32.xlu0 %v327, 88
        %v390 = vpop.permute.xlu0 %389
        %v392 = vsel %vm330, %v388, 0
        %v395 = vsel %vm330, %v390, 0
        %397 = vmatpush.bf16.xpose.msra.mxu0 0
        %398 = vmatpush.bf16.xpose.msra.mxu0 0
        %399 = vmatpush.bf16.xpose.msra.mxu0 0
        %400 = vmatpush.bf16.xpose.msra.mxu0 0
        %401 = vmatpush.bf16.xpose.msra.mxu0 0
        %402 = vmatpush.bf16.xpose.msra.mxu0 0
        %403 = vmatpush.bf16.xpose.msra.mxu0 0
        %404 = vmatpush.bf16.xpose.msra.mxu0 %v395
        %405 = vmatmul.bf16.gmra.mxu0 %v392
        %v406 = vpop.f32.mrf.mxu0
        %v407 = vadd.f32 0.0, %v406
        %v408 = vpop.f32.mrf.mxu0
        %409 = vdwg.mxu0
        %v410 = vsel %vm330, %v407, -inf
        %411 = vmax.xlane.f32.xlu0 %v410
        %v412 = vpop.xlane.xlu0 %411
        %v413 = vsub.f32 %v407, %v412
        %v414 = vmul.f32 %v413, 1.442695
        %v415 = vpow.pop %v414
        %v416 = vsel %vm330, %v415, 0.0
        %417 = vadd.xlane.f32.xlu0 %v416
        %v418 = vpop.xlane.xlu0 %417
        %v419 = vpack.c.bf16 %v415, %v415
        %420 = vrot.lane.b32.xlu0 %v362, 56
        %v421 = vpop.permute.xlu0 %420
        %v423 = vsel %vm330, %v419, 0
        %v426 = vsel %vm368, %v421, 0
        %428 = vmatpush.bf16.msra.mxu0 0
        %429 = vmatpush.bf16.msra.mxu0 0
        %430 = vmatpush.bf16.msra.mxu0 0
        %431 = vmatpush.bf16.msra.mxu0 0
        %432 = vmatpush.bf16.msra.mxu0 0
        %433 = vmatpush.bf16.msra.mxu0 0
        %434 = vmatpush.bf16.msra.mxu0 0
        %435 = vmatpush.bf16.msra.mxu0 %v426
        %436 = vmatmul.bf16.gmra.mxu0 %v423
        %v437 = vpop.f32.mrf.mxu0
        %v438 = vadd.f32 0.0, %v437
        %v439 = vpop.f32.mrf.mxu0
        %440 = vdwg.mxu0
        %v441 = vrcp.pop %v418
        %v442 = vmul.f32 %v438, %v441
        %443 = vrot.lane.b32.xlu0 %v362, 112
        %v444 = vpop.permute.xlu0 %443
        %445 = vrot.lane.b32.xlu0 %v327, 80
        %v446 = vpop.permute.xlu0 %445
        %v448 = vsel %vm330, %v444, 0
        %v451 = vsel %vm330, %v446, 0
        %453 = vmatpush.bf16.xpose.msra.mxu0 0
        %454 = vmatpush.bf16.xpose.msra.mxu0 0
        %455 = vmatpush.bf16.xpose.msra.mxu0 0
        %456 = vmatpush.bf16.xpose.msra.mxu0 0
        %457 = vmatpush.bf16.xpose.msra.mxu0 0
        %458 = vmatpush.bf16.xpose.msra.mxu0 0
        %459 = vmatpush.bf16.xpose.msra.mxu0 0
        %460 = vmatpush.bf16.xpose.msra.mxu0 %v451
        %461 = vmatmul.bf16.gmra.mxu0 %v448
        %v462 = vpop.f32.mrf.mxu0
        %v463 = vadd.f32 0.0, %v462
        %v464 = vpop.f32.mrf.mxu0
        %465 = vdwg.mxu0
        %v466 = vsel %vm330, %v463, -inf
        %467 = vmax.xlane.f32.xlu0 %v466
        %v468 = vpop.xlane.xlu0 %467
        %v469 = vsub.f32 %v463, %v468
        %v470 = vmul.f32 %v469, 1.442695
        %v471 = vpow.pop %v470
        %v472 = vsel %vm330, %v471, 0.0
        %473 = vadd.xlane.f32.xlu0 %v472
        %v474 = vpop.xlane.xlu0 %473
        %v475 = vpack.c.bf16 %v471, %v471
        %476 = vrot.lane.b32.xlu0 %v362, 48
        %v477 = vpop.permute.xlu0 %476
        %v479 = vsel %vm330, %v475, 0
        %v482 = vsel %vm368, %v477, 0
        %484 = vmatpush.bf16.msra.mxu0 0
        %485 = vmatpush.bf16.msra.mxu0 0
        %486 = vmatpush.bf16.msra.mxu0 0
        %487 = vmatpush.bf16.msra.mxu0 0
        %488 = vmatpush.bf16.msra.mxu0 0
        %489 = vmatpush.bf16.msra.mxu0 0
        %490 = vmatpush.bf16.msra.mxu0 0
        %491 = vmatpush.bf16.msra.mxu0 %v482
        %492 = vmatmul.bf16.gmra.mxu0 %v479
        %v493 = vpop.f32.mrf.mxu0
        %v494 = vadd.f32 0.0, %v493
        %v495 = vpop.f32.mrf.mxu0
        %496 = vdwg.mxu0
        %v497 = vrcp.pop %v474
        %v498 = vmul.f32 %v494, %v497
        %499 = vrot.lane.b32.xlu0 %v362, 104
        %v500 = vpop.permute.xlu0 %499
        %501 = vrot.lane.b32.xlu0 %v327, 72
        %v502 = vpop.permute.xlu0 %501
        %v504 = vsel %vm330, %v500, 0
        %v507 = vsel %vm330, %v502, 0
        %509 = vmatpush.bf16.xpose.msra.mxu0 0
        %510 = vmatpush.bf16.xpose.msra.mxu0 0
        %511 = vmatpush.bf16.xpose.msra.mxu0 0
        %512 = vmatpush.bf16.xpose.msra.mxu0 0
        %513 = vmatpush.bf16.xpose.msra.mxu0 0
        %514 = vmatpush.bf16.xpose.msra.mxu0 0
        %515 = vmatpush.bf16.xpose.msra.mxu0 0
        %516 = vmatpush.bf16.xpose.msra.mxu0 %v507
        %517 = vmatmul.bf16.gmra.mxu0 %v504
        %v518 = vpop.f32.mrf.mxu0
        %v519 = vadd.f32 0.0, %v518
        %v520 = vpop.f32.mrf.mxu0
        %521 = vdwg.mxu0
        %v522 = vsel %vm330, %v519, -inf
        %523 = vmax.xlane.f32.xlu0 %v522
        %v524 = vpop.xlane.xlu0 %523
        %v525 = vsub.f32 %v519, %v524
        %v526 = vmul.f32 %v525, 1.442695
        %v527 = vpow.pop %v526
        %v528 = vsel %vm330, %v527, 0.0
        %529 = vadd.xlane.f32.xlu0 %v528
        %v530 = vpop.xlane.xlu0 %529
        %v531 = vpack.c.bf16 %v527, %v527
        %532 = vrot.lane.b32.xlu0 %v362, 40
        %v533 = vpop.permute.xlu0 %532
        %v535 = vsel %vm330, %v531, 0
        %v538 = vsel %vm368, %v533, 0
        %540 = vmatpush.bf16.msra.mxu0 0
        %541 = vmatpush.bf16.msra.mxu0 0
        %542 = vmatpush.bf16.msra.mxu0 0
        %543 = vmatpush.bf16.msra.mxu0 0
        %544 = vmatpush.bf16.msra.mxu0 0
        %545 = vmatpush.bf16.msra.mxu0 0
        %546 = vmatpush.bf16.msra.mxu0 0
        %547 = vmatpush.bf16.msra.mxu0 %v538
        %548 = vmatmul.bf16.gmra.mxu0 %v535
        %v549 = vpop.f32.mrf.mxu0
        %v550 = vadd.f32 0.0, %v549
        %v551 = vpop.f32.mrf.mxu0
        %552 = vdwg.mxu0
        %v553 = vrcp.pop %v530
        %v554 = vmul.f32 %v550, %v553
        %556 = vrot.lane.b32.xlu0 %v442, 8
        %v557 = vpop.permute.xlu0 %556
        %560 = vrot.lane.b32.xlu0 %v498, 16
        %v561 = vpop.permute.xlu0 %560
        %564 = vrot.lane.b32.xlu0 %v554, 24
        %v565 = vpop.permute.xlu0 %564
        %v567 = vsel %vm330, %v386, %v557
        %vm568 = vcmask 130048
        %v569 = vsel %vm568, %v567, %v561
        %vm570 = vcmask 195584
        %v571 = vsel %vm570, %v569, %v565
        %572 = vst.msk [vmem:[%s236] sm:$0xff] %vm263, %v571
        %s573 = sand.u32 %s121, 1
        %s574 = scalar_lea.sflag [#allocation4], %s573
        %s575 = sand.u32 %s121, 1
        %s576 = smul.addr %s575, 8
        %s577 = scalar_lea.vmem [#allocation7], %s576
        // Predicated region
        $region41: #{tpu_custom_call.1} parent=31 // pred_check
          %p578 = pneg %p131
        $region42: #{tpu_custom_call.1} parent=31 // pred_check_branch
          %580 = sbr.rel (%p578) target = $region44
        $region43: #{tpu_custom_call.1} parent=31 // pred_region
          %582 = vsyncadd %s574, 0
          %s583 = sadd.s32 %s26, %s25
          %s584 = smul.addr %s583, 8
          %s585 = scalar_lea.hbm %s3, %s584
          %s587 = sshll.u32 %s577, 4
          %s588 = int_to_ptr.vmem [resolvable:$true] %s587
          %s589 = sshll.u32 %s585, 4
          %s590 = int_to_ptr.hbm [resolvable:$true] %s589
          %592 = dma.vmem_to_hbm [thread:$0]  %s588, 128, %s590, %s574
        $region44: #{tpu_custom_call.1} parent=31 // pred_fallthru
          _
      $region32: #{tpu_custom_call.1} parent=5 // pred_fallthru
        _
      %p593 = scmp.le.s32.totalorder 2, %s16
      // Predicated region
      $region45: #{tpu_custom_call.1} parent=5 // pred_check
        %p594 = pneg %p593
      $region46: #{tpu_custom_call.1} parent=5 // pred_check_branch
        %596 = sbr.rel (%p594) target = $region48
      $region47: #{tpu_custom_call.1} parent=5 // pred_region
        %s597 = ssub.s32 %s16, 2
        // Predicated region
        $region49: #{tpu_custom_call.1} parent=47 // pred_check
          %p598 = pneg %p137
        $region50: #{tpu_custom_call.1} parent=47 // pred_check_branch
          %600 = sbr.rel (%p598) target = $region52
        $region51: #{tpu_custom_call.1} parent=47 // pred_region
          %s601 = sand.u32 %s122, 1
          %s602 = scalar_lea.sflag [#allocation4], %s601
          %s603 = sand.u32 %s122, 1
          %s604 = smul.addr %s603, 8
          %s605 = scalar_lea.vmem [#allocation7], %s604
          %607 = dma.done %s602, 128
        $region52: #{tpu_custom_call.1} parent=47 // pred_fallthru
          _
      $region48: #{tpu_custom_call.1} parent=5 // pred_fallthru
        _
    $region6: #{tpu_custom_call.1} parent=1 // loop_footer
      %s20 = sadd.s32 1, %s16
    $region7: #{tpu_custom_call.1} parent=1 // loop_footer_branch
      %15 = sbr.rel target = $region3
    $region8: #{tpu_custom_call.1} parent=1 // loop_exit
      _
    %608 = vsyncpa [#allocation3], 1
    %s609 = scalar_lea.sflag [#allocation3], 1
    %610 = vsyncpa %s609, 1
    %611 = vsyncpa [#allocation6], 1
    %612 = vsyncpa [#allocation4], 1
    %s613 = scalar_lea.sflag [#allocation4], 1
    %614 = vsyncpa %s613, 1

</llo_original>
